<compile_context>
chip_gen: v7x
topology: tpu7x:2x2x1
jax: 0.10.0
libtpu: 0.0.40
codegen_flags: <defaults>
</compile_context>

<pallas_src>
import functools

import jax
import jax.numpy as jnp
from jax.experimental import pallas as pl
from jax.experimental.pallas import tpu as pltpu


_VMEM_LIMIT = 32 * 1024 * 1024        # explicit: > v5e's 16 MiB default, < v7x physical
_STATS_BLOCK_BYTES = 4 * 1024 * 1024  # per x block   (x2 double buffering ->  8 MiB)
_APPLY_BLOCK_BYTES = 4 * 1024 * 1024  # per x/y block (x4 with double buffer -> 16 MiB)
_FUSED_BLOCK_BYTES = 3 * 1024 * 1024  # per x/y block (x4 with double buffer -> 12 MiB)


def _round_up(v, m):
    return (v + m - 1) // m * m


def _pick_tiles(n, f_pad, block_bytes, max_tile_n):
    """Pick (tile_n % 8 == 0, tile_f % 128 == 0) with tile_n*tile_f*4 <= block_bytes.

    Prefers the full (128-padded) feature width so each block is one contiguous
    run of rows in HBM; remaining budget goes to tile_n."""
    tile_f = f_pad
    if 8 * tile_f * 4 > block_bytes:
        tile_f = max(128, (block_bytes // (8 * 4)) // 128 * 128)
    max_rows = max(8, (block_bytes // (tile_f * 4)) // 8 * 8)
    tile_n = max(8, min(_round_up(n, 8), max_tile_n, max_rows))
    return tile_n, tile_f


# ----------------------------- Pallas kernels ------------------------------


def _partial_sums_kernel(x_ref, sum_ref, sumsq_ref, *, n_rows, tile_n,
                         n_blocks_per_split, needs_mask):
    """Accumulate per-feature sum / sum-of-squares for one reduction split.

    grid = (P_splits, F_blocks, N_blocks_per_split); last axis is the reduction.
    sum_ref / sumsq_ref are (8, tile_f) OUTPUT blocks whose index only depends
    on (split, F-block), so they stay resident in VMEM across the N loop and
    serve directly as accumulators (no scratch, no finalize copy).
    """
    ni = pl.program_id(2)

    @pl.when(ni == 0)
    def _init():
        sum_ref[...] = jnp.zeros_like(sum_ref)
        sumsq_ref[...] = jnp.zeros_like(sumsq_ref)

    x = x_ref[...].astype(jnp.float32)                      # (tile_n, tile_f)
    tn, tf = x.shape
    if needs_mask:
        # True global starting row of the (unclamped) block this step targets;
        # rows >= n_rows are padding/duplicates and must not contribute.
        row_start = (pl.program_id(0) * n_blocks_per_split + ni) * tile_n
        ridx = jax.lax.broadcasted_iota(jnp.int32, (tn, tf), 0) + row_start
        x = jnp.where(ridx < n_rows, x, 0.0)
    x3 = x.reshape(tn // 8, 8, tf)                          # sublane-group split
    sum_ref[...] += jnp.sum(x3, axis=0)
    sumsq_ref[...] += jnp.sum(x3 * x3, axis=0)


def _apply_kernel(x_ref, scale_ref, shift_ref, out_ref):
    """y = x * scale + shift with per-feature (1, tile_f) scale/shift rows."""
    x = x_ref[...].astype(jnp.float32)
    out_ref[...] = (x * scale_ref[...] + shift_ref[...]).astype(out_ref.dtype)


def _fused_train_kernel(x_ref, w_ref, b_ref, y_ref, mean_ref, var_ref, *,
                        n_rows, inverse, is_init):
    """Fused batch-stats + normalization for one full-column block (N, tile_f).

    Used when the whole batch fits in VMEM: x is read from HBM once and y
    written once, instead of the separate stats-read / apply-read / write.
    """
    x = x_ref[...].astype(jnp.float32)                      # (n_rows, tile_f)
    n = jnp.float32(n_rows)
    mean = jnp.sum(x, axis=0, keepdims=True) / n            # (1, tile_f)
    sumsq = jnp.sum(x * x, axis=0, keepdims=True)
    # TODO(synk): single-pass sumsq - n*mean^2 loses precision when |mean| >> std;
    # switch to a two-pass / Welford scheme for far-off-center data.  N == 1
    # yields NaN variance (matches torch.var unbiased).
    var = jnp.maximum((sumsq - n * mean * mean) / (n - 1.0), 0.0)
    if is_init:                                             # init step of the module
        w = jnp.sqrt(var)
        b = mean
    else:
        w = w_ref[...].astype(jnp.float32)
        b = b_ref[...].astype(jnp.float32)
    if inverse:
        scale = jnp.sqrt(var) / w
        shift = mean - b * scale
    else:
        scale = w / jnp.sqrt(var)
        shift = b - mean * scale
    y_ref[...] = (x * scale + shift).astype(y_ref.dtype)
    mean_ref[...] = mean
    var_ref[...] = var


# ------------------------------ JAX wrappers --------------------------------


@functools.partial(jax.jit, static_argnames=("max_tile_n",))
def batch_stats(x, max_tile_n=2048):
    """Returns (mean, var), each (F,); var is unbiased (N-1), like torch.var."""
    n, f = x.shape
    f_pad = _round_up(f, 128)
    tile_n, tile_f = _pick_tiles(n, f_pad, _STATS_BLOCK_BYTES, max_tile_n)
    nb_total = pl.cdiv(n, tile_n)
    f_blocks = pl.cdiv(f, tile_f)
    # Megacore: if there is only one F block, split the N reduction into two
    # parallel chunks so both TensorCores (v7x) contribute HBM bandwidth.
    p_splits = 2 if (f_blocks < 2 and nb_total >= 2) else 1
    n_blocks_per_split = pl.cdiv(nb_total, p_splits)
    needs_mask = (n % tile_n != 0) or (p_splits * n_blocks_per_split != nb_total)

    def x_index_map(pi, fi, ni):
        # Clamp so an over-covering split never DMAs out of bounds; the kernel's
        # row mask zeroes any duplicated/out-of-range rows.
        return (jnp.minimum(pi * n_blocks_per_split + ni, nb_total - 1), fi)

    kernel = functools.partial(
        _partial_sums_kernel, n_rows=n, tile_n=tile_n,
        n_blocks_per_split=n_blocks_per_split, needs_mask=needs_mask)

    sums, sumsqs = pl.pallas_call(
        kernel,
        out_shape=(jax.ShapeDtypeStruct((p_splits * 8, f), jnp.float32),
                   jax.ShapeDtypeStruct((p_splits * 8, f), jnp.float32)),
        grid_spec=pltpu.PrefetchScalarGridSpec(
            num_scalar_prefetch=0,
            grid=(p_splits, f_blocks, n_blocks_per_split),
            in_specs=[pl.BlockSpec((tile_n, tile_f), x_index_map)],
            out_specs=(pl.BlockSpec((8, tile_f), lambda pi, fi, ni: (pi, fi)),
                       pl.BlockSpec((8, tile_f), lambda pi, fi, ni: (pi, fi)))),
        compiler_params=pltpu.CompilerParams(
            dimension_semantics=("parallel", "parallel", "arbitrary"),
            vmem_limit_bytes=_VMEM_LIMIT),
    )(x)

    nf = jnp.float32(n)
    s = jnp.sum(sums, axis=0)                                # (F,) tiny combine
    q = jnp.sum(sumsqs, axis=0)
    mean = s / nf
    # Clamp: single-pass variance can go slightly negative -> NaN in sqrt later.
    var = jnp.maximum((q - nf * mean * mean) / (nf - 1.0), 0.0)
    return mean, var


@jax.jit
def bn_scale_shift(x, scale, shift):
    """Elementwise y = x*scale + shift with per-feature scale/shift (F,) rows."""
    n, f = x.shape
    f_pad = _round_up(f, 128)
    tile_n, tile_f = _pick_tiles(n, f_pad, _APPLY_BLOCK_BYTES, 2048)
    n_blocks = pl.cdiv(n, tile_n)
    f_blocks = pl.cdiv(f, tile_f)
    if n_blocks * f_blocks < 2 and n > 8:                    # give megacore >=2 blocks
        tile_n = max(8, _round_up(-(-n // 2), 8))
        n_blocks = pl.cdiv(n, tile_n)

    scale2 = scale.reshape(1, f).astype(jnp.float32)
    shift2 = shift.reshape(1, f).astype(jnp.float32)

    return pl.pallas_call(
        _apply_kernel,
        out_shape=jax.ShapeDtypeStruct((n, f), x.dtype),
        grid_spec=pltpu.PrefetchScalarGridSpec(
            num_scalar_prefetch=0,
            # F is the OUTER axis so scale/shift blocks are fetched once per
            # F block, not once per grid step.
            grid=(f_blocks, n_blocks),
            in_specs=[pl.BlockSpec((tile_n, tile_f), lambda fi, ni: (ni, fi)),
                      pl.BlockSpec((1, tile_f), lambda fi, ni: (0, fi)),
                      pl.BlockSpec((1, tile_f), lambda fi, ni: (0, fi))],
            out_specs=pl.BlockSpec((tile_n, tile_f), lambda fi, ni: (ni, fi))),
        compiler_params=pltpu.CompilerParams(
            dimension_semantics=("parallel", "parallel"),
            vmem_limit_bytes=_VMEM_LIMIT),
    )(x, scale2, shift2)


def _fused_fits(n):
    return _round_up(max(n, 1), 8) * 128 * 4 <= _FUSED_BLOCK_BYTES


@functools.partial(jax.jit, static_argnames=("inverse", "is_init"))
def fused_train_forward(x, weights, bias, *, inverse, is_init):
    """Single-pass batch-stats + normalization; returns (y, mean, var)."""
    n, f = x.shape
    n8 = _round_up(n, 8)
    f_pad = _round_up(f, 128)
    tile_f = min(f_pad, max(128, (_FUSED_BLOCK_BYTES // (n8 * 4)) // 128 * 128))
    if pl.cdiv(f, tile_f) < 2 and f > 128:                   # megacore: >=2 F blocks
        tile_f = _round_up(-(-f // 2), 128)
    f_blocks = pl.cdiv(f, tile_f)

    kernel = functools.partial(_fused_train_kernel, n_rows=n,
                               inverse=inverse, is_init=is_init)
    y, mean, var = pl.pallas_call(
        kernel,
        out_shape=(jax.ShapeDtypeStruct((n, f), x.dtype),
                   jax.ShapeDtypeStruct((1, f), jnp.float32),
                   jax.ShapeDtypeStruct((1, f), jnp.float32)),
        grid_spec=pltpu.PrefetchScalarGridSpec(
            num_scalar_prefetch=0,
            grid=(f_blocks,),
            in_specs=[pl.BlockSpec((n, tile_f), lambda fi: (0, fi)),
                      pl.BlockSpec((1, tile_f), lambda fi: (0, fi)),
                      pl.BlockSpec((1, tile_f), lambda fi: (0, fi))],
            out_specs=(pl.BlockSpec((n, tile_f), lambda fi: (0, fi)),
                       pl.BlockSpec((1, tile_f), lambda fi: (0, fi)),
                       pl.BlockSpec((1, tile_f), lambda fi: (0, fi)))),
        compiler_params=pltpu.CompilerParams(
            dimension_semantics=("parallel",),
            vmem_limit_bytes=_VMEM_LIMIT),
    )(x, weights.reshape(1, f).astype(jnp.float32),
      bias.reshape(1, f).astype(jnp.float32))
    return y, mean[0], var[0]


# --------------------------------- module -----------------------------------


class BatchNormStats1d:
    """JAX/Pallas port of the PyTorch BatchNormStats1d module."""

    def __init__(self, num_features, eps=1e-05, decay=0.1):
        self.eps = eps          # NOTE: eps is unused in the reference forward
        self.decay = decay
        self.num_features = num_features
        self.running_mean = jnp.zeros((num_features,), jnp.float32)
        self.running_var = jnp.ones((num_features,), jnp.float32)
        self.weights = jnp.ones((1, num_features), jnp.float32)
        self.bias = jnp.zeros((1, num_features), jnp.float32)
        self.init = True

    def __call__(self, x, training, inverse):
        n, f = x.shape
        training = bool(training)
        inverse = bool(inverse)

        y = None
        batch_mean = batch_var = None
        if self.init or training:
            # init / training both normalize with the *batch* statistics.
            if _fused_fits(n):
                y, batch_mean, batch_var = fused_train_forward(
                    x, self.weights, self.bias,
                    inverse=inverse, is_init=bool(self.init))
            else:
                batch_mean, batch_var = batch_stats(x)

        if self.init:
            self.weights = jnp.sqrt(batch_var).reshape(1, f)
            self.bias = batch_mean.reshape(1, f)
            self.running_mean = batch_mean
            self.running_var = batch_var
            self.init = False

        if training:
            used_mean, used_var = batch_mean, batch_var
            self.running_mean = (self.running_mean
                                 - self.decay * (self.running_mean - batch_mean))
            self.running_var = (self.running_var
                                - self.decay * (self.running_var - batch_var))
        else:
            used_mean, used_var = self.running_mean, self.running_var

        if y is None:
            # Eval path (or large-batch training fallback): fold the per-feature
            # math into one scale/shift (F-sized, plain JAX) -> single FMA kernel.
            sqrt_var = jnp.sqrt(used_var)
            w = self.weights[0]
            b = self.bias[0]
            if inverse:
                scale = sqrt_var / w
                shift = used_mean - b * scale
            else:
                scale = w / sqrt_var
                shift = b - used_mean * scale
            y = bn_scale_shift(x, scale, shift)

        # Expanded var/weights returned by the PyTorch module: lazy broadcast
        # outside the kernel (no redundant HBM writes unless actually consumed).
        var_exp = jnp.broadcast_to(used_var.reshape(1, f), x.shape)
        w_exp = jnp.broadcast_to(self.weights, x.shape)
        return y, var_exp, w_exp


# --------------------------------- reference ---------------------------------


def _ref_forward(x, training, inverse, state, decay=0.1):
    """Pure-jnp reference mirroring the PyTorch forward (sanity check)."""
    n, f = x.shape
    if state["init"]:
        m, v = x.mean(0), x.var(0, ddof=1)
        state["weights"] = jnp.sqrt(v).reshape(1, f)
        state["bias"] = m.reshape(1, f)
        state["running_mean"] = m
        state["running_var"] = v
        state["init"] = False
    if training:
        used_mean, used_var = x.mean(0), x.var(0, ddof=1)
        state["running_mean"] = state["running_mean"] - decay * (state["running_mean"] - used_mean)
        state["running_var"] = state["running_var"] - decay * (state["running_var"] - used_var)
    else:
        used_mean, used_var = state["running_mean"], state["running_var"]
    used_mean = jnp.broadcast_to(used_mean.reshape(1, f), x.shape)
    used_var = jnp.broadcast_to(used_var.reshape(1, f), x.shape)
    w = jnp.broadcast_to(state["weights"], x.shape)
    b = jnp.broadcast_to(state["bias"], x.shape)
    if inverse:
        y = (x - b) / w
        y = y * jnp.sqrt(used_var) + used_mean
    else:
        y = (x - used_mean) / jnp.sqrt(used_var)
        y = w * y + b
    return y, used_var, w


def _fresh_ref_state(f):
    return {"init": True,
            "weights": jnp.ones((1, f), jnp.float32),
            "bias": jnp.zeros((1, f), jnp.float32),
            "running_mean": jnp.zeros((f,), jnp.float32),
            "running_var": jnp.ones((f,), jnp.float32)}


def _check(got, want, name, atol=1e-5):
    assert jnp.allclose(got, want, atol=atol), f"{name} mismatch"


# ----------------------------------- main ------------------------------------


if __name__ == "__main__":
    key = jax.random.PRNGKey(0)
    k1, k2, k3, k4, k5 = jax.random.split(key, 5)

    # --- direct kernel tests: stats (multi N-block reduction + 2-way split +
    # --- ragged masking) and scale/shift (2 row blocks, unaligned F) ----------
    xs = jax.random.normal(k4, (50, 200), dtype=jnp.float32)
    m_k, v_k = batch_stats(xs, max_tile_n=16)      # forces 4 N-blocks, P=2 split
    jax.block_until_ready((m_k, v_k))
    _check(m_k, xs.mean(0), "stats mean")
    _check(v_k, xs.var(0, ddof=1), "stats var")

    sc = jax.random.normal(k5, (200,), dtype=jnp.float32)
    sh = jax.random.normal(k2, (200,), dtype=jnp.float32)
    y_k = bn_scale_shift(xs, sc, sh)
    jax.block_until_ready(y_k)
    _check(y_k, xs * sc.reshape(1, -1) + sh.reshape(1, -1), "scale_shift")

    # --- test 1: small shape (N=8, F=32): fused init/train + eval/inverse -----
    N, F = 8, 32
    x = jax.random.normal(k1, (N, F), dtype=jnp.float32)
    x2 = jax.random.normal(k2, (N, F), dtype=jnp.float32)

    mod = BatchNormStats1d(F)
    ref_state = _fresh_ref_state(F)

    y, v, w = mod(x, training=True, inverse=False)
    jax.block_until_ready((y, v, w))
    y_r, v_r, w_r = _ref_forward(x, True, False, ref_state)
    _check(y, y_r, "output(train,fwd)")
    _check(v, v_r, "var(train,fwd)")
    _check(w, w_r, "weights(train,fwd)")
    _check(mod.running_mean, ref_state["running_mean"], "running_mean")
    _check(mod.running_var, ref_state["running_var"], "running_var")

    y, v, w = mod(x2, training=False, inverse=True)
    jax.block_until_ready((y, v, w))
    y_r, v_r, w_r = _ref_forward(x2, False, True, ref_state)
    _check(y, y_r, "output(eval,inv)")
    _check(v, v_r, "var(eval,inv)")
    _check(w, w_r, "weights(eval,inv)")

    # --- test 2: unaligned shape (N=24, F=200): fused path with 2 F blocks ----
    N2, F2 = 24, 200
    xb = jax.random.normal(k3, (N2, F2), dtype=jnp.float32)
    mod2 = BatchNormStats1d(F2)
    ref_state2 = _fresh_ref_state(F2)
    y, v, w = mod2(xb, training=True, inverse=False)
    jax.block_until_ready((y, v, w))
    y_r, v_r, w_r = _ref_forward(xb, True, False, ref_state2)
    _check(y, y_r, "output(pad)")
    _check(v, v_r, "var(pad)")
    _check(w, w_r, "weights(pad)")
    _check(mod2.running_mean, ref_state2["running_mean"], "running_mean(pad)")
    _check(mod2.running_var, ref_state2["running_var"], "running_var(pad)")

    print("KERNEL_OK")
</pallas_src>

<mosaic_0001>
module attributes {stable_mosaic.version = 11 : i64} {
  func.func @_partial_sums_kernel(%arg0: i32, %arg1: i32, %arg2: i32, %arg3: memref<16x256xf32, #tpu.memory_space<vmem>>, %arg4: memref<8x256xf32, #tpu.memory_space<vmem>>, %arg5: memref<8x256xf32, #tpu.memory_space<vmem>>) attributes {dimension_semantics = [#tpu.dimension_semantics<parallel>, #tpu.dimension_semantics<parallel>, #tpu.dimension_semantics<arbitrary>], iteration_bounds = array<i64: 2, 1, 2>, scalar_prefetch = 0 : i64, scratch_operands = 0 : i64, tpu.core_type = #tpu.core_type<tc>, window_params = [{transform_indices = @transform_0, window_bounds = array<i64: 16, 256>}, {transform_indices = @transform_1, window_bounds = array<i64: 8, 256>}, {transform_indices = @transform_2, window_bounds = array<i64: 8, 256>}]} {
    %c0_i32 = arith.constant 0 : i32
    %0 = arith.cmpi eq, %arg2, %c0_i32 : i32
    %1 = arith.extui %0 : i1 to i32
    %c0_i32_0 = arith.constant 0 : i32
    %2 = arith.cmpi ne, %1, %c0_i32_0 : i32
    scf.if %2 {
      %cst_12 = arith.constant 0.000000e+00 : f32
      %24 = vector.broadcast %cst_12 : f32 to vector<8x256xf32>
      %c0_13 = arith.constant 0 : index
      %c0_14 = arith.constant 0 : index
      %25 = vector.load %arg4[%c0_13, %c0_14] : memref<8x256xf32, #tpu.memory_space<vmem>>, vector<8x256xf32>
      tpu.vector_store %arg4[%c0_13, %c0_14], %24 {strides = array<i32>} : memref<8x256xf32, #tpu.memory_space<vmem>>, vector<8x256xf32>,
      %cst_15 = arith.constant 0.000000e+00 : f32
      %26 = vector.broadcast %cst_15 : f32 to vector<8x256xf32>
      %c0_16 = arith.constant 0 : index
      %c0_17 = arith.constant 0 : index
      %27 = vector.load %arg5[%c0_16, %c0_17] : memref<8x256xf32, #tpu.memory_space<vmem>>, vector<8x256xf32>
      tpu.vector_store %arg5[%c0_16, %c0_17], %26 {strides = array<i32>} : memref<8x256xf32, #tpu.memory_space<vmem>>, vector<8x256xf32>,
    } else {
    }
    %c0 = arith.constant 0 : index
    %c0_1 = arith.constant 0 : index
    %3 = vector.load %arg3[%c0, %c0_1] : memref<16x256xf32, #tpu.memory_space<vmem>>, vector<16x256xf32>
    %c2_i32 = arith.constant 2 : i32
    %4 = arith.muli %arg0, %c2_i32 : i32
    %5 = arith.addi %4, %arg2 : i32
    %c16_i32 = arith.constant 16 : i32
    %6 = arith.muli %5, %c16_i32 : i32
    %7 = tpu.iota {dimensions = array<i32: 0>} : vector<16x256xi32>
    %8 = vector.broadcast %6 : i32 to vector<16x256xi32>
    %9 = arith.addi %7, %8 : vector<16x256xi32>
    %c50_i32 = arith.constant 50 : i32
    %10 = vector.broadcast %c50_i32 : i32 to vector<16x256xi32>
    %11 = arith.cmpi slt, %9, %10 : vector<16x256xi32>
    %cst = arith.constant 0.000000e+00 : f32
    %12 = vector.broadcast %cst : f32 to vector<16x256xf32>
    %13 = arith.select %11, %3, %12 : vector<16x256xi1>, vector<16x256xf32>
    %14 = vector.shape_cast %13 : vector<16x256xf32> to vector<2x8x256xf32>
    %c0_2 = arith.constant 0 : index
    %c0_3 = arith.constant 0 : index
    %15 = vector.load %arg4[%c0_2, %c0_3] : memref<8x256xf32, #tpu.memory_space<vmem>>, vector<8x256xf32>
    %cst_4 = arith.constant dense<0.000000e+00> : vector<8x256xf32>
    %16 = vector.multi_reduction <add>, %14, %cst_4 [0] : vector<2x8x256xf32> to vector<8x256xf32>
    %17 = arith.addf %15, %16 : vector<8x256xf32>
    %c0_5 = arith.constant 0 : index
    %c0_6 = arith.constant 0 : index
    %18 = vector.load %arg4[%c0_5, %c0_6] : memref<8x256xf32, #tpu.memory_space<vmem>>, vector<8x256xf32>
    tpu.vector_store %arg4[%c0_5, %c0_6], %17 {strides = array<i32>} : memref<8x256xf32, #tpu.memory_space<vmem>>, vector<8x256xf32>,
    %c0_7 = arith.constant 0 : index
    %c0_8 = arith.constant 0 : index
    %19 = vector.load %arg5[%c0_7, %c0_8] : memref<8x256xf32, #tpu.memory_space<vmem>>, vector<8x256xf32>
    %20 = arith.mulf %14, %14 : vector<2x8x256xf32>
    %cst_9 = arith.constant dense<0.000000e+00> : vector<8x256xf32>
    %21 = vector.multi_reduction <add>, %20, %cst_9 [0] : vector<2x8x256xf32> to vector<8x256xf32>
    %22 = arith.addf %19, %21 : vector<8x256xf32>
    %c0_10 = arith.constant 0 : index
    %c0_11 = arith.constant 0 : index
    %23 = vector.load %arg5[%c0_10, %c0_11] : memref<8x256xf32, #tpu.memory_space<vmem>>, vector<8x256xf32>
    tpu.vector_store %arg5[%c0_10, %c0_11], %22 {strides = array<i32>} : memref<8x256xf32, #tpu.memory_space<vmem>>, vector<8x256xf32>,
    return
  }
  func.func @transform_0(%arg0: i32, %arg1: i32, %arg2: i32) -> (i32, i32) {
    %c2_i32 = arith.constant 2 : i32
    %0 = arith.muli %arg0, %c2_i32 : i32
    %1 = arith.addi %0, %arg2 : i32
    %c3_i32 = arith.constant 3 : i32
    %2 = arith.minsi %1, %c3_i32 : i32
    %c0_i32 = arith.constant 0 : i32
    return %2, %arg1 : i32, i32
  }
  func.func @transform_1(%arg0: i32, %arg1: i32, %arg2: i32) -> (i32, i32) {
    %c0_i32 = arith.constant 0 : i32
    return %arg0, %arg1 : i32, i32
  }
  func.func @transform_2(%arg0: i32, %arg1: i32, %arg2: i32) -> (i32, i32) {
    %c0_i32 = arith.constant 0 : i32
    return %arg0, %arg1 : i32, i32
  }
}

</mosaic_0001>

<llo_original>
// kernel: batch_stats.1
$region0: #{batch_stats.1}
  #allocation0 [shape = 'u32[]', space=smem, size = 0x4, offset = 0x4, fixed_abs, tag = 'smem constant byte address 0x4 - core index']
  #allocation1 [shape = 'u32[144,128]{1,0:T(1,128)}', space=vmem, size = 0x12000, scoped, tag = 'internal scratch']
  %s0 = inlined_call_operand.hbm [shape: f32[50,200], index: 0, kind: input, shape index: {}]
  %s1 = inlined_call_operand.vmem [shape: f32[16,200], index: 1, kind: output, shape index: {0}]
  %s2 = inlined_call_operand.vmem [shape: f32[16,200], index: 2, kind: output, shape index: {1}]
  %3 = xla_tuple %s1, %s2
  %s4 = sld [smem:[#allocation0]]
  $region53: #{batch_stats.1} parent=0
    _
  %s6 = ssub.s32 1, %s4
  %s7 = scalar_select 0, %s6, %s4
  $region1: #{batch_stats.1} parent=0
    #allocation2 [shape = 'u8[32768]{0}', space=vmem, size = 0x8000, scoped, tag = 'input window, operand 0']
    #allocation3 [shape = 's32[2]{0}', space=sflag, size = 0x8, scoped, tag = 'scoped memory for batch_stats.1']
    %8 = vsyncpa [#allocation3], 0
    %s9 = scalar_lea.sflag [#allocation3], 1
    %10 = vsyncpa %s9, 0
    loop: start=0, step=1, limit=6
    $region2: #{batch_stats.1} parent=1 // loop_pre_header
      _
    $region3: #{batch_stats.1} parent=1 // loop_header
      %s12 = sphi 0, %s16
      %p13 = scmp.ge.s32.totalorder %s12, 6
      %s19 = sphi 0, %s38
      %s20 = sphi 0, %s34
      %s21 = sphi 0, %s30
      %s22 = sphi 0, %s19
      %s23 = sphi 0, %s20
      %s24 = sphi 0, %s21
      %s25 = sphi 0, %s22
      %s26 = sphi 0, %s23
      %s27 = sphi 0, %s24
      %s51 = sphi 0, %s53
      %s54 = sphi 0, %s51
      %s55 = sphi 0, %s54
      %s71 = sphi 0, %s55
      %s79 = sphi 0, %s81
      %s82 = sphi 0, %s79
      %s83 = sphi 0, %s82
      %s99 = sphi 0, %s83
      %s107 = sphi 0, %s109
      %s110 = sphi 0, %s107
      %s111 = sphi 0, %s110
      %s127 = sphi 0, %s111
    $region4: #{batch_stats.1} parent=1 // loop_header_branch
      %15 = sbr.rel (%p13) target = $region8
    $region5: #{batch_stats.1} parent=1 // loop_body
      %s17 = ssub.s32 %s12, 1
      %s18 = ssub.s32 %s12, 2
      %s28 = sadd.s32 1, %s21
      %p29 = scmp.ge.s32.totalorder %s28, 2
      %s30 = scalar_select %p29, 0, %s28
      %s31 = sadd.s32 1, %s20
      %s32 = scalar_select %p29, %s31, %s20
      %p33 = scmp.ge.s32.totalorder %s32, 1
      %s34 = scalar_select %p33, 0, %s32
      %s35 = sadd.s32 1, %s19
      %s36 = scalar_select %p33, %s35, %s19
      %p37 = scmp.ge.s32.totalorder %s36, 2
      %s38 = scalar_select %p37, 0, %s36
      %s39 = smul.u32 %s19, 2
      %s40 = sadd.s32 %s39, %s21
      %p41 = scmp.lt.s32.totalorder %s40, 3
      %s42 = scalar_select %p41, %s40, 3
      %s43 = smul.u32 %s38, 2
      %s44 = sadd.s32 %s43, %s30
      %p45 = scmp.lt.s32.totalorder %s44, 3
      %s46 = scalar_select %p45, %s44, 3
      %s47 = ssub.s32 %s42, %s46
      %s48 = ssub.s32 %s20, %s34
      %s49 = sor.u32 %s47, %s48
      %p50 = scmp.eq.s32.totalorder %s49, 0
      %s52 = sadd.s32 %s51, 1
      %s53 = scalar_select %p50, %s51, %s52
      %p56 = pneg %p50
      %p57 = scmp.eq.s32.totalorder %s12, 3
      %p58 = por %p56, %p57
      %p59 = scmp.ne.s32.totalorder %s51, %s54
      %p60 = scmp.eq.s32.totalorder %s12, 0
      %p61 = por %p59, %p60
      %p62 = scmp.ne.s32.totalorder %s51, %s54
      %p63 = scmp.eq.s32.totalorder %s17, 3
      %p64 = por %p62, %p63
      %p65 = scmp.ne.s32.totalorder %s54, %s55
      %p66 = scmp.eq.s32.totalorder %s17, 0
      %p67 = por %p65, %p66
      %p68 = scmp.ne.s32.totalorder %s54, %s55
      %p69 = scmp.eq.s32.totalorder %s18, 3
      %p70 = por %p68, %p69
      %p72 = scmp.ne.s32.totalorder %s55, %s71
      %p73 = scmp.eq.s32.totalorder %s18, 0
      %p74 = por %p72, %p73
      %s75 = ssub.s32 %s19, %s38
      %s76 = ssub.s32 %s20, %s34
      %s77 = sor.u32 %s75, %s76
      %p78 = scmp.eq.s32.totalorder %s77, 0
      %s80 = sadd.s32 %s79, 1
      %s81 = scalar_select %p78, %s79, %s80
      %p84 = pneg %p78
      %p85 = scmp.eq.s32.totalorder %s12, 3
      %p86 = por %p84, %p85
      %p87 = scmp.ne.s32.totalorder %s79, %s82
      %p88 = scmp.eq.s32.totalorder %s12, 0
      %p89 = por %p87, %p88
      %p90 = scmp.ne.s32.totalorder %s79, %s82
      %p91 = scmp.eq.s32.totalorder %s17, 3
      %p92 = por %p90, %p91
      %p93 = scmp.ne.s32.totalorder %s82, %s83
      %p94 = scmp.eq.s32.totalorder %s17, 0
      %p95 = por %p93, %p94
      %p96 = scmp.ne.s32.totalorder %s82, %s83
      %p97 = scmp.eq.s32.totalorder %s18, 3
      %p98 = por %p96, %p97
      %p100 = scmp.ne.s32.totalorder %s83, %s99
      %p101 = scmp.eq.s32.totalorder %s18, 0
      %p102 = por %p100, %p101
      %s103 = ssub.s32 %s19, %s38
      %s104 = ssub.s32 %s20, %s34
      %s105 = sor.u32 %s103, %s104
      %p106 = scmp.eq.s32.totalorder %s105, 0
      %s108 = sadd.s32 %s107, 1
      %s109 = scalar_select %p106, %s107, %s108
      %p112 = pneg %p106
      %p113 = scmp.eq.s32.totalorder %s12, 3
      %p114 = por %p112, %p113
      %p115 = scmp.ne.s32.totalorder %s107, %s110
      %p116 = scmp.eq.s32.totalorder %s12, 0
      %p117 = por %p115, %p116
      %p118 = scmp.ne.s32.totalorder %s107, %s110
      %p119 = scmp.eq.s32.totalorder %s17, 3
      %p120 = por %p118, %p119
      %p121 = scmp.ne.s32.totalorder %s110, %s111
      %p122 = scmp.eq.s32.totalorder %s17, 0
      %p123 = por %p121, %p122
      %p124 = scmp.ne.s32.totalorder %s110, %s111
      %p125 = scmp.eq.s32.totalorder %s18, 3
      %p126 = por %p124, %p125
      %p128 = scmp.ne.s32.totalorder %s111, %s127
      %p129 = scmp.eq.s32.totalorder %s18, 0
      %p130 = por %p128, %p129
      %p131 = scmp.le.s32.totalorder 1, %s12
      %p132 = scmp.lt.s32.totalorder %s12, 5
      %p133 = pnand %p131, %p132
      %p134 = pneg %p133
      // Predicated region
      $region9: #{batch_stats.1} parent=5 // pred_check
        _
      $region10: #{batch_stats.1} parent=5 // pred_check_branch
        %136 = sbr.rel (%p133) target = $region12
      $region11: #{batch_stats.1} parent=5 // pred_region
        %s137 = ssub.s32 %s12, 1
      $region12: #{batch_stats.1} parent=5 // pred_fallthru
        _
      %p138 = scmp.lt.s32.totalorder %s12, 4
      // Predicated region
      $region13: #{batch_stats.1} parent=5 // pred_check
        %p139 = pneg %p138
      $region14: #{batch_stats.1} parent=5 // pred_check_branch
        %141 = sbr.rel (%p139) target = $region16
      $region15: #{batch_stats.1} parent=5 // pred_region
        // Predicated region
        $region17: #{batch_stats.1} parent=15 // pred_check
          %p142 = pneg %p61
        $region18: #{batch_stats.1} parent=15 // pred_check_branch
          %144 = sbr.rel (%p142) target = $region20
        $region19: #{batch_stats.1} parent=15 // pred_region
          %s145 = sand.u32 %s51, 1
          %s146 = scalar_lea.sflag [#allocation3], %s145
          %s147 = sand.u32 %s51, 1
          %s148 = smul.addr %s147, 32
          %s149 = scalar_lea.vmem [#allocation2], %s148
          %s150 = smul.u32 %s19, 2
          %s151 = sadd.s32 %s150, %s21
          %p152 = scmp.lt.s32.totalorder %s151, 3
          %s153 = scalar_select %p152, %s151, 3
          %s154 = smul.u32 2, %s153
          %s155 = smul.u32 2, %s20
          %s156 = ssub.s32 7, %s154
          %p157 = scmp.lt.s32.totalorder %s156, 2
          %s158 = scalar_select %p157, %s156, 2
          %s159 = smul.u32 128, %s158
          %s160 = smul.u32 %s159, 2
          %s162 = ssub.s32 512, %s160
          %163 = vsyncadd %s146, %s162
          %p164 = scmp.ne.s32.totalorder 0, %s160
          %s165 = smul.addr %s154, 2
          %s166 = sadd.s32 %s155, %s165
          %s167 = smul.addr %s166, 128
          %s168 = scalar_lea.hbm %s0, %s167
          %s169 = smul.u32 16, %s158
          %s170 = sshll.u32 %s149, 4
          %s171 = int_to_ptr.vmem [resolvable:$true] %s170
          %s172 = sshll.u32 %s169, 4
          %176 = dma.hbm_to_vmem [thread:$0]  (%p164), %s168, %s172, %s171, %s146, 256, 256, 16
        $region20: #{batch_stats.1} parent=15 // pred_fallthru
          _
      $region16: #{batch_stats.1} parent=5 // pred_fallthru
        _
      %p177 = scmp.le.s32.totalorder 1, %s12
      %p178 = scmp.lt.s32.totalorder %s12, 5
      %p179 = pnand %p177, %p178
      %p180 = pneg %p179
      // Predicated region
      $region21: #{batch_stats.1} parent=5 // pred_check
        _
      $region22: #{batch_stats.1} parent=5 // pred_check_branch
        %182 = sbr.rel (%p179) target = $region24
      $region23: #{batch_stats.1} parent=5 // pred_region
        %s183 = ssub.s32 %s12, 1
        %s184 = sand.u32 %s54, 1
        %s185 = scalar_lea.sflag [#allocation3], %s184
        %s186 = sand.u32 %s54, 1
        %s187 = smul.addr %s186, 32
        %s188 = scalar_lea.vmem [#allocation2], %s187
        // Predicated region
        $region25: #{batch_stats.1} parent=23 // pred_check
          %p189 = pneg %p67
        $region26: #{batch_stats.1} parent=23 // pred_check_branch
          %191 = sbr.rel (%p189) target = $region28
        $region27: #{batch_stats.1} parent=23 // pred_region
          %192 = dma.done %s185, 512
        $region28: #{batch_stats.1} parent=23 // pred_fallthru
          _
        %s193 = sand.u32 %s54, 1
        %s194 = scalar_lea.sflag [#allocation3], %s193
        %s195 = sand.u32 %s54, 1
        %s196 = smul.addr %s195, 32
        %s197 = scalar_lea.vmem [#allocation2], %s196
        %p198 = pneg %p67
        %p199 = pneg %p64
        %p200 = pneg %p95
        %p201 = pneg %p92
        %s202 = smul.u32 2, %s23
        %p203 = scmp.lt.s32.totalorder %s22, 1
        %s204 = scalar_select %p203, %s22, 1
        %p205 = scmp.lt.s32.totalorder %s202, 1
        %s206 = scalar_select %p205, %s202, 1
        %s207 = smul.addr %s204, 2
        %s208 = sadd.s32 %s206, %s207
        %s209 = smul.addr %s208, 8
        %s210 = scalar_lea.vmem %s1, %s209
        %p211 = pneg %p123
        %p212 = pneg %p120
        %s213 = smul.u32 2, %s23
        %p214 = scmp.lt.s32.totalorder %s22, 1
        %s215 = scalar_select %p214, %s22, 1
        %p216 = scmp.lt.s32.totalorder %s213, 1
        %s217 = scalar_select %p216, %s213, 1
        %s218 = smul.addr %s215, 2
        %s219 = sadd.s32 %s217, %s218
        %s220 = smul.addr %s219, 8
        %s221 = scalar_lea.vmem %s2, %s220
        %s222 = smul.u32 %s22, 2
        %s223 = sadd.s32 %s222, %s24
        %p224 = scmp.lt.s32.totalorder %s223, 3
        %s225 = scalar_select %p224, %s223, 3
        %s226 = smul.u32 2, %s225
        %s227 = smul.u32 2, %s23
        %s228 = ssub.s32 7, %s226
        %p229 = scmp.lt.s32.totalorder %s228, 2
        %s230 = scalar_select %p229, %s228, 2
        %s231 = smul.u32 128, %s230
        %s232 = smul.u32 %s231, 2
        %s233 = smul.u32 2, %s23
        %p234 = scmp.lt.s32.totalorder %s22, 1
        %s235 = scalar_select %p234, %s22, 1
        %p236 = scmp.lt.s32.totalorder %s233, 1
        %s237 = scalar_select %p236, %s233, 1
        %s238 = smul.addr %s235, 2
        %s239 = sadd.s32 %s237, %s238
        %s240 = smul.addr %s239, 8
        %s241 = scalar_lea.vmem %s1, %s240
        %s242 = smul.u32 2, %s23
        %s243 = smul.u32 2, %s23
        %p244 = scmp.lt.s32.totalorder %s22, 1
        %s245 = scalar_select %p244, %s22, 1
        %p246 = scmp.lt.s32.totalorder %s243, 1
        %s247 = scalar_select %p246, %s243, 1
        %s248 = smul.addr %s245, 2
        %s249 = sadd.s32 %s247, %s248
        %s250 = smul.addr %s249, 8
        %s251 = scalar_lea.vmem %s2, %s250
        %s252 = smul.u32 2, %s23
        %p253 = scmp.eq.s32.totalorder %s24, 0
        // Predicated region
        $region29: #{batch_stats.1} parent=23 // pred_check
          %p254 = pneg %p253
        $region30: #{batch_stats.1} parent=23 // pred_check_branch
          %256 = sbr.rel (%p254) target = $region32
        $region31: #{batch_stats.1} parent=23 // pred_region
          %257 = vst [vmem:[%s241] sm:$0xff] 0.0
          %258 = vst [vmem:[%s241 + $0x8] sm:$0xff] 0.0
          %259 = vst [vmem:[%s251] sm:$0xff] 0.0
          %260 = vst [vmem:[%s251 + $0x8] sm:$0xff] 0.0
        $region32: #{batch_stats.1} parent=23 // pred_fallthru
          _
        %v261 = vld [vmem:[%s188] sm:$0xff]
        %v262 = vld [vmem:[%s188 + $0x8] sm:$0xff]
        %v263 = vld [vmem:[%s188 + $0x10] sm:$0xff]
        %v264 = vld [vmem:[%s188 + $0x18] sm:$0xff]
        %s265 = smul.u32 %s22, 2
        %s266 = sadd.s32 %s265, %s24
        %s267 = smul.u32 %s266, 16
        %v268 = vlaneseq
        %v269 = vshrl.u32 %v268, 7
        %v270 = vadd.s32 %v269, 8
        %v271 = vstv %s267
        %v272 = vadd.s32 %v269, %v271
        %v273 = vadd.s32 %v270, %v271
        %vm274 = vcmp.lt.s32.totalorder %v272, 50
        %vm275 = vcmp.lt.s32.totalorder %v273, 50
        %v276 = vsel %vm274, %v261, 0.0
        %v277 = vsel %vm274, %v262, 0.0
        %v278 = vsel %vm275, %v263, 0.0
        %v279 = vsel %vm275, %v264, 0.0
        %v280 = vld [vmem:[%s241] sm:$0xff]
        %v281 = vld [vmem:[%s241 + $0x8] sm:$0xff]
        %v282 = vadd.f32 %v276, %v278
        %v283 = vadd.f32 %v277, %v279
        %v284 = vadd.f32 %v280, %v282
        %v285 = vadd.f32 %v281, %v283
        %286 = vst [vmem:[%s241] sm:$0xff] %v284
        %287 = vst [vmem:[%s241 + $0x8] sm:$0xff] %v285
        %v288 = vld [vmem:[%s251] sm:$0xff]
        %v289 = vld [vmem:[%s251 + $0x8] sm:$0xff]
        %v290 = vmul.f32 %v276, %v276
        %v291 = vmul.f32 %v277, %v277
        %v292 = vmul.f32 %v278, %v278
        %v293 = vmul.f32 %v279, %v279
        %v294 = vadd.f32 %v290, %v292
        %v295 = vadd.f32 %v291, %v293
        %v296 = vadd.f32 %v288, %v294
        %v297 = vadd.f32 %v289, %v295
        %298 = vst [vmem:[%s251] sm:$0xff] %v296
        %299 = vst [vmem:[%s251 + $0x8] sm:$0xff] %v297
        %s300 = smul.u32 2, %s23
        %p301 = scmp.lt.s32.totalorder %s22, 1
        %s302 = scalar_select %p301, %s22, 1
        %p303 = scmp.lt.s32.totalorder %s300, 1
        %s304 = scalar_select %p303, %s300, 1
        %s305 = smul.addr %s302, 2
        %s306 = sadd.s32 %s304, %s305
        %s307 = smul.addr %s306, 8
        %s308 = scalar_lea.vmem %s1, %s307
        %s309 = smul.u32 2, %s23
        %p310 = scmp.lt.s32.totalorder %s22, 1
        %s311 = scalar_select %p310, %s22, 1
        %p312 = scmp.lt.s32.totalorder %s309, 1
        %s313 = scalar_select %p312, %s309, 1
        %s314 = smul.addr %s311, 2
        %s315 = sadd.s32 %s313, %s314
        %s316 = smul.addr %s315, 8
        %s317 = scalar_lea.vmem %s2, %s316
        // Predicated region
        $region33: #{batch_stats.1} parent=23 // pred_check
          %p318 = pneg %p92
        $region34: #{batch_stats.1} parent=23 // pred_check_branch
          %320 = sbr.rel (%p318) target = $region36
        $region35: #{batch_stats.1} parent=23 // pred_region
          %s321 = smul.u32 2, %s23
        $region36: #{batch_stats.1} parent=23 // pred_fallthru
          _
        // Predicated region
        $region37: #{batch_stats.1} parent=23 // pred_check
          %p322 = pneg %p120
        $region38: #{batch_stats.1} parent=23 // pred_check_branch
          %324 = sbr.rel (%p322) target = $region40
        $region39: #{batch_stats.1} parent=23 // pred_region
          %s325 = smul.u32 2, %s23
        $region40: #{batch_stats.1} parent=23 // pred_fallthru
          _
      $region24: #{batch_stats.1} parent=5 // pred_fallthru
        _
      %p326 = scmp.le.s32.totalorder 2, %s12
      // Predicated region
      $region41: #{batch_stats.1} parent=5 // pred_check
        %p327 = pneg %p326
      $region42: #{batch_stats.1} parent=5 // pred_check_branch
        %329 = sbr.rel (%p327) target = $region44
      $region43: #{batch_stats.1} parent=5 // pred_region
        %s330 = ssub.s32 %s12, 2
        // Predicated region
        $region45: #{batch_stats.1} parent=43 // pred_check
          %p331 = pneg %p98
        $region46: #{batch_stats.1} parent=43 // pred_check_branch
          %333 = sbr.rel (%p331) target = $region48
        $region47: #{batch_stats.1} parent=43 // pred_region
          %s334 = smul.u32 2, %s26
          %p335 = scmp.lt.s32.totalorder %s25, 1
          %s336 = scalar_select %p335, %s25, 1
          %p337 = scmp.lt.s32.totalorder %s334, 1
          %s338 = scalar_select %p337, %s334, 1
          %s339 = smul.addr %s336, 2
          %s340 = sadd.s32 %s338, %s339
          %s341 = smul.addr %s340, 8
          %s342 = scalar_lea.vmem %s1, %s341
        $region48: #{batch_stats.1} parent=43 // pred_fallthru
          _
        // Predicated region
        $region49: #{batch_stats.1} parent=43 // pred_check
          %p343 = pneg %p126
        $region50: #{batch_stats.1} parent=43 // pred_check_branch
          %345 = sbr.rel (%p343) target = $region52
        $region51: #{batch_stats.1} parent=43 // pred_region
          %s346 = smul.u32 2, %s26
          %p347 = scmp.lt.s32.totalorder %s25, 1
          %s348 = scalar_select %p347, %s25, 1
          %p349 = scmp.lt.s32.totalorder %s346, 1
          %s350 = scalar_select %p349, %s346, 1
          %s351 = smul.addr %s348, 2
          %s352 = sadd.s32 %s350, %s351
          %s353 = smul.addr %s352, 8
          %s354 = scalar_lea.vmem %s2, %s353
        $region52: #{batch_stats.1} parent=43 // pred_fallthru
          _
      $region44: #{batch_stats.1} parent=5 // pred_fallthru
        _
    $region6: #{batch_stats.1} parent=1 // loop_footer
      %s16 = sadd.s32 1, %s12
    $region7: #{batch_stats.1} parent=1 // loop_footer_branch
      %11 = sbr.rel target = $region3
    $region8: #{batch_stats.1} parent=1 // loop_exit
      _
    %355 = vsyncpa [#allocation3], 1
    %s356 = scalar_lea.sflag [#allocation3], 1
    %357 = vsyncpa %s356, 1

</llo_original>
